<compile_context>
chip_gen: v5e
topology: v5e:2x2
jax: 0.10.0
libtpu: 0.0.40
codegen_flags: <defaults>
</compile_context>

<pallas_src>
import functools
import math

import jax
import jax.numpy as jnp
from jax.experimental import pallas as pl
from jax.experimental.pallas import tpu as pltpu


# Row tile (sublane axis, multiple of 8) and feature tile (lane axis, multiple
# of 128). 512 x 1024 f32 = 2 MiB per block; double-buffered in + out (+ the
# tiny per-row scale column) ~ 8.5 MiB of VMEM -> fits the scoped default on
# every generation (16 MiB v5e, 32 MiB v6e/v7x) with headroom.
_TILE_R_TARGET = 512
_TILE_F_TARGET = 1024


def _pick_tile(dim: int, unit: int, target: int) -> int:
    """Largest tile <= target honoring the (8,128) layout rule."""
    if dim % unit != 0:
        # Non-aligned dim: only a full-extent block is legal (masked stores).
        return dim
    return min(dim, target)


# ----------------------------- Pallas kernel --------------------------------
def _droppath_kernel(scale_ref, x_ref, o_ref):
    # scale_ref: (TILE_R, 1)      per-row scale = floor(keep_prob + u) / keep_prob
    # x_ref:     (TILE_R, TILE_F) activations
    # One VPU multiply per element under a pure HBM stream; the (TILE_R, 1)
    # column broadcasts across the lane axis. Explicit cast keeps bf16 clean.
    o_ref[...] = (x_ref[...] * scale_ref[...]).astype(o_ref.dtype)


# ----------------------------- wrappers --------------------------------------
@functools.partial(jax.jit, static_argnames=("drop_prob",))
def drop_path_train(x, rand, *, drop_prob):
    """Training-mode DropPath via a single tiled Pallas call.

    x:    (B, ...) activations
    rand: (B,) or (B,1) per-sample uniforms in [0, 1) (torch.rand equivalent)
    """
    keep_prob = 1.0 - drop_prob
    B = x.shape[0]
    if x.ndim >= 2:
        F = x.shape[-1]
        R = B * math.prod(x.shape[1:-1])
    else:
        F, R = 1, B
    rows_per_sample = R // B

    # Per-sample Bernoulli(keep_prob) mask folded with the compile-time
    # 1/keep_prob scale, expanded to one scalar per row of the (R, F) slab.
    # Cast to x.dtype so a bf16 main stream stays bf16 (halves HBM bytes).
    mask = jnp.floor(keep_prob + rand.reshape(B).astype(jnp.float32))
    scale = (mask * (1.0 / keep_prob)).astype(x.dtype)
    scale_rows = jnp.broadcast_to(scale[:, None], (B, rows_per_sample))
    scale_rows = scale_rows.reshape(R, 1)

    x2d = x.reshape(R, F)  # lane-dense slab: sequence folded into rows

    tile_r = _pick_tile(R, 8, _TILE_R_TARGET)
    tile_f = _pick_tile(F, 128, _TILE_F_TARGET)
    grid = (pl.cdiv(R, tile_r), pl.cdiv(F, tile_f))

    out2d = pl.pallas_call(
        _droppath_kernel,
        out_shape=jax.ShapeDtypeStruct((R, F), x.dtype),
        grid=grid,
        in_specs=[
            pl.BlockSpec((tile_r, 1), lambda r, f: (r, 0)),
            pl.BlockSpec((tile_r, tile_f), lambda r, f: (r, f)),
        ],
        out_specs=pl.BlockSpec((tile_r, tile_f), lambda r, f: (r, f)),
        # x is dead after DropPath in the ViTMAE residual branch: donate its
        # buffer to the output (XLA copies if the caller still needs it).
        input_output_aliases={1: 0},
        compiler_params=pltpu.CompilerParams(
            dimension_semantics=("parallel", "parallel"),
            vmem_limit_bytes=32 * 1024 * 1024,
        ),
    )(scale_rows, x2d)
    return out2d.reshape(x.shape)


def drop_path(x, drop_prob, *, training, rand=None, key=None):
    """Full DropPath.forward semantics (eval / drop_prob==0 -> identity)."""
    if drop_prob == 0.0 or not training:
        return x
    if rand is None:
        if key is None:
            raise ValueError("training-mode DropPath needs `rand` or a PRNG `key`")
        # TODO(synk): could also be generated on-chip with pltpu.prng_seed +
        # pltpu.prng_random_bits; kept host-side so output is checkable.
        rand = jax.random.uniform(key, (x.shape[0],), dtype=jnp.float32)
    return drop_path_train(x, rand, drop_prob=drop_prob)


# ----------------------------- pure-JAX reference ----------------------------
def drop_path_reference(x, rand, drop_prob, training=True):
    if drop_prob == 0.0 or not training:
        return x
    keep_prob = 1.0 - drop_prob
    shape = (x.shape[0],) + (1,) * (x.ndim - 1)
    random_tensor = jnp.floor(keep_prob + rand.reshape(shape).astype(x.dtype))
    return x / keep_prob * random_tensor


# ----------------------------- main -------------------------------------------
if __name__ == "__main__":
    key = jax.random.PRNGKey(0)
    k_x, k_rand, k_x2, k_rand2 = jax.random.split(key, 4)

    # ViTMAE-like residual-branch activation: (batch, seq, hidden).
    # hidden=128 keeps the lane axis dense (full 128-wide unmasked stores).
    B, S, H = 2, 16, 128
    drop_prob = 0.25
    keep_prob = 1.0 - drop_prob

    x = jax.random.normal(k_x, (B, S, H), dtype=jnp.float32)
    rand = jax.random.uniform(k_rand, (B,), dtype=jnp.float32)

    # --- training mode (stochastic depth active), f32 ---
    y = drop_path(x, drop_prob, training=True, rand=rand)
    jax.block_until_ready(y)
    assert y.shape == x.shape and y.dtype == x.dtype

    ref = drop_path_reference(x, rand, drop_prob)
    max_err = float(jnp.max(jnp.abs(y - ref)))
    assert jnp.allclose(y, ref, rtol=1e-6, atol=1e-6), max_err

    # Structural check: every sample is either dropped (all-zero) or x/keep_prob.
    for b in range(B):
        kept = jnp.allclose(y[b], x[b] / keep_prob, rtol=1e-6, atol=1e-6)
        dropped = jnp.allclose(y[b], jnp.zeros_like(y[b]))
        assert bool(kept) or bool(dropped), f"sample {b} neither kept nor dropped"

    # --- bf16 path + non-128-aligned hidden (full-extent lane fallback) ---
    x_bf = jax.random.normal(k_x2, (2, 8, 32), dtype=jnp.bfloat16)
    rand_bf = jax.random.uniform(k_rand2, (2,), dtype=jnp.float32)
    y_bf = drop_path(x_bf, drop_prob, training=True, rand=rand_bf)
    jax.block_until_ready(y_bf)
    assert y_bf.shape == x_bf.shape and y_bf.dtype == jnp.bfloat16
    ref_bf = drop_path_reference(x_bf.astype(jnp.float32), rand_bf, drop_prob)
    assert jnp.allclose(y_bf.astype(jnp.float32), ref_bf, rtol=2e-2, atol=2e-2)

    # --- identity branches (eval mode / drop_prob == 0) ---
    y_eval = drop_path(x, drop_prob, training=False)
    assert jnp.array_equal(y_eval, x)
    y_p0 = drop_path(x, 0.0, training=True, rand=rand)
    assert jnp.array_equal(y_p0, x)

    print("KERNEL_OK")
</pallas_src>

<mosaic_0001>
module attributes {stable_mosaic.version = 11 : i64} {
  func.func @_droppath_kernel(%arg0: i32, %arg1: i32, %arg2: memref<32x1xf32, #tpu.memory_space<vmem>>, %arg3: memref<32x128xf32, #tpu.memory_space<vmem>>, %arg4: memref<32x128xf32, #tpu.memory_space<vmem>>) attributes {dimension_semantics = [#tpu.dimension_semantics<parallel>, #tpu.dimension_semantics<parallel>], iteration_bounds = array<i64: 1, 1>, scalar_prefetch = 0 : i64, scratch_operands = 0 : i64, tpu.core_type = #tpu.core_type<tc>, window_params = [{transform_indices = @transform_0, window_bounds = array<i64: 32, 1>}, {transform_indices = @transform_1, window_bounds = array<i64: 32, 128>}, {transform_indices = @transform_2, window_bounds = array<i64: 32, 128>}]} {
    %c0 = arith.constant 0 : index
    %c0_0 = arith.constant 0 : index
    %0 = vector.load %arg3[%c0, %c0_0] : memref<32x128xf32, #tpu.memory_space<vmem>>, vector<32x128xf32>
    %c0_1 = arith.constant 0 : index
    %c0_2 = arith.constant 0 : index
    %1 = vector.load %arg2[%c0_1, %c0_2] : memref<32x1xf32, #tpu.memory_space<vmem>>, vector<32x1xf32>
    %2 = vector.broadcast %1 : vector<32x1xf32> to vector<32x128xf32>
    %3 = arith.mulf %0, %2 : vector<32x128xf32>
    %c0_3 = arith.constant 0 : index
    %c0_4 = arith.constant 0 : index
    %4 = vector.load %arg4[%c0_3, %c0_4] : memref<32x128xf32, #tpu.memory_space<vmem>>, vector<32x128xf32>
    tpu.vector_store %arg4[%c0_3, %c0_4], %3 {strides = array<i32>} : memref<32x128xf32, #tpu.memory_space<vmem>>, vector<32x128xf32>,
    return
  }
  func.func @transform_0(%arg0: i32, %arg1: i32) -> (i32, i32) {
    %c0_i32 = arith.constant 0 : i32
    %c0_i32_0 = arith.constant 0 : i32
    return %arg0, %c0_i32 : i32, i32
  }
  func.func @transform_1(%arg0: i32, %arg1: i32) -> (i32, i32) {
    %c0_i32 = arith.constant 0 : i32
    return %arg0, %arg1 : i32, i32
  }
  func.func @transform_2(%arg0: i32, %arg1: i32) -> (i32, i32) {
    %c0_i32 = arith.constant 0 : i32
    return %arg0, %arg1 : i32, i32
  }
}

</mosaic_0001>

<llo_original>
// kernel: drop_path_train.1
$region0: #{drop_path_train.1}
  #allocation0 [shape = 'u32[]', space=smem, size = 0x4, offset = 0x4, fixed_abs, tag = 'smem constant byte address 0x4 - core index']
  #allocation1 [shape = 'u32[72,128]{1,0:T(1,128)}', space=vmem, size = 0x9000, scoped, tag = 'internal scratch']
  %s0 = inlined_call_operand.vmem [shape: f32[32,1], index: 0, kind: input, shape index: {}]
  %s1 = inlined_call_operand.vmem [shape: f32[32,128], index: 1, kind: input, shape index: {}, may-alias: {1,2}]
  %s2 = inlined_call_operand.vmem [shape: f32[32,128], index: 2, kind: output, shape index: {}, may-alias: {1,2}]
  %s3 = sld [smem:[#allocation0]]
  $region18: #{drop_path_train.1} parent=0
    _
  %s5 = ssub.s32 1, %s3
  %s6 = scalar_select 0, %s5, %s3
  // Predicated region
  $region2: #{drop_path_train.1} parent=0 // pred_check
    _
  $region3: #{drop_path_train.1} parent=0 // pred_check_branch
    %8 = sbr.rel (0) target = $region5
  $region4: #{drop_path_train.1} parent=0 // pred_region
    _
  $region5: #{drop_path_train.1} parent=0 // pred_fallthru
    _
  // Predicated region
  $region6: #{drop_path_train.1} parent=0 // pred_check
    _
  $region7: #{drop_path_train.1} parent=0 // pred_check_branch
    %10 = sbr.rel (0) target = $region9
  $region8: #{drop_path_train.1} parent=0 // pred_region
    _
  $region9: #{drop_path_train.1} parent=0 // pred_fallthru
    _
  %v11 = vld [vmem:[%s1] sm:$0xff]
  %v12 = vld [vmem:[%s1 + $0x8] sm:$0xff]
  %v13 = vld [vmem:[%s1 + $0x10] sm:$0xff]
  %v14 = vld [vmem:[%s1 + $0x18] sm:$0xff]
  %v15 = vld [vmem:[%s0] sm:$0xff]
  %v16 = vld [vmem:[%s0 + $0x8] sm:$0xff]
  %v17 = vld [vmem:[%s0 + $0x10] sm:$0xff]
  %v18 = vld [vmem:[%s0 + $0x18] sm:$0xff]
  %20 = vset.pattern.permute.xlu0 0
  %21 = vperm.xlu0 %20, %v15
  %v22 = vpop.permute.xlu0 %21
  %25 = vset.pattern.permute.xlu0 0
  %26 = vperm.xlu0 %25, %v16
  %v27 = vpop.permute.xlu0 %26
  %30 = vset.pattern.permute.xlu0 0
  %31 = vperm.xlu0 %30, %v17
  %v32 = vpop.permute.xlu0 %31
  %35 = vset.pattern.permute.xlu0 0
  %36 = vperm.xlu0 %35, %v18
  %v37 = vpop.permute.xlu0 %36
  %v39 = vmul.f32 %v11, %v22
  %v40 = vmul.f32 %v12, %v27
  %v41 = vmul.f32 %v13, %v32
  %v42 = vmul.f32 %v14, %v37
  %43 = vst [vmem:[%s2] sm:$0xff] %v39
  %44 = vst [vmem:[%s2 + $0x8] sm:$0xff] %v40
  %45 = vst [vmem:[%s2 + $0x10] sm:$0xff] %v41
  %46 = vst [vmem:[%s2 + $0x18] sm:$0xff] %v42
  // Predicated region
  $region10: #{drop_path_train.1} parent=0 // pred_check
    _
  $region11: #{drop_path_train.1} parent=0 // pred_check_branch
    %48 = sbr.rel (0) target = $region13
  $region12: #{drop_path_train.1} parent=0 // pred_region
    _
  $region13: #{drop_path_train.1} parent=0 // pred_fallthru
    _
  // Predicated region
  $region14: #{drop_path_train.1} parent=0 // pred_check
    _
  $region15: #{drop_path_train.1} parent=0 // pred_check_branch
    %50 = sbr.rel (0) target = $region17
  $region16: #{drop_path_train.1} parent=0 // pred_region
    _
  $region17: #{drop_path_train.1} parent=0 // pred_fallthru
    _

</llo_original>
